<compile_context>
chip_gen: v5e
topology: v5e:2x2
jax: 0.10.0
libtpu: 0.0.40
codegen_flags: <defaults>
</compile_context>

<pallas_src>
import math
from functools import partial

import jax
import jax.numpy as jnp
from jax.experimental import pallas as pl
from jax.experimental.pallas import tpu as pltpu


def _fourier_kernel(x_ref, f_ref, p_ref, o_ref, *, gain):
    # x_ref: (tb, 1), f_ref/p_ref: (1, D), o_ref: (tb, D)
    x = x_ref[...].astype(jnp.float32)           # (tb, 1)
    f = f_ref[...].astype(jnp.float32)           # (1, D)
    p = p_ref[...].astype(jnp.float32)           # (1, D)
    feat = jnp.cos(x * f + p) * gain             # outer product + phase, cos, gain
    o_ref[...] = feat.astype(o_ref.dtype)


def fourier_features(x, freqs, phases, *, normalize=False, gain=1.0,
                     vmem_tile_bytes=4 * 1024 * 1024):
    """x: [B], freqs/phases: [D] -> [B, D] in x.dtype."""
    B = x.shape[0]
    D = freqs.shape[0]
    out_dtype = x.dtype
    out_itemsize = jnp.dtype(out_dtype).itemsize

    module_gain = math.sqrt(2.0) if normalize else 1.0
    total_gain = float(module_gain * gain)

    x2 = x.reshape(B, 1)
    f2 = freqs.reshape(1, D)
    p2 = phases.reshape(1, D)

    # Row (sublane) tile: full D stays on the lane axis; size tb so one
    # double-buffered output tile (~2*tb*D*itemsize) stays under the budget,
    # rounded to the sublane packing of the output dtype.
    sub = 16 if out_itemsize == 2 else 8
    tb = max(sub, vmem_tile_bytes // max(1, D * out_itemsize))
    tb = max(sub, (tb // sub) * sub)
    if tb >= B:
        tb = B  # single block; block_shape == array dims is always legal
    grid_b = pl.cdiv(B, tb)

    cost = pl.CostEstimate(
        flops=3 * B * D,                       # mul + add + gain-mul per element
        transcendentals=B * D,                 # one cos per element
        bytes_accessed=(B * D * out_itemsize
                        + D * (f2.dtype.itemsize + p2.dtype.itemsize)
                        + B * x2.dtype.itemsize),
    )

    kernel = partial(_fourier_kernel, gain=total_gain)

    return pl.pallas_call(
        kernel,
        out_shape=jax.ShapeDtypeStruct((B, D), out_dtype),
        grid_spec=pl.GridSpec(
            grid=(grid_b,),
            in_specs=[
                pl.BlockSpec((tb, 1), lambda i: (i, 0)),    # x rows for this tile
                pl.BlockSpec((1, D), lambda i: (0, 0)),     # freqs (resident)
                pl.BlockSpec((1, D), lambda i: (0, 0)),     # phases (resident)
            ],
            out_specs=pl.BlockSpec((tb, D), lambda i: (i, 0)),  # lane-dense full-D rows
        ),
        compiler_params=pltpu.CompilerParams(
            dimension_semantics=("parallel",),
        ),
        cost_estimate=cost,
    )(x2, f2, p2)


def _reference(x, freqs, phases, normalize, gain):
    module_gain = math.sqrt(2.0) if normalize else 1.0
    out = jnp.cos(x.astype(jnp.float32)[:, None] * freqs.astype(jnp.float32)[None, :]
                  + phases.astype(jnp.float32)[None, :]) * (module_gain * gain)
    return out.astype(x.dtype)


if __name__ == "__main__":
    key = jax.random.PRNGKey(0)
    k_x, k_f, k_p = jax.random.split(key, 3)

    B = 8            # batch (timesteps)
    D = 256          # num_channels
    bandwidth = 0.5
    normalize = True
    call_gain = 1.0

    # Deterministic "buffers" matching the PyTorch __init__:
    #   freqs  = 2*pi*bandwidth*randn(D)
    #   phases = 2*pi*rand(D)
    freqs = 2.0 * math.pi * bandwidth * jax.random.normal(k_f, (D,), dtype=jnp.float32)
    phases = 2.0 * math.pi * jax.random.uniform(k_p, (D,), dtype=jnp.float32)

    x = jax.random.normal(k_x, (B,), dtype=jnp.float32)

    out = fourier_features(x, freqs, phases, normalize=normalize, gain=call_gain)
    out = jax.block_until_ready(out)

    ref = _reference(x, freqs, phases, normalize, call_gain)
    assert out.shape == (B, D)
    assert out.dtype == x.dtype
    assert jnp.allclose(out, ref, atol=1e-5, rtol=1e-5)

    # bf16 input/output path (exercises the 16-row sublane packing branch).
    x_bf16 = x.astype(jnp.bfloat16)
    out_bf16 = jax.block_until_ready(
        fourier_features(x_bf16, freqs, phases, normalize=normalize, gain=call_gain))
    ref_bf16 = _reference(x_bf16, freqs, phases, normalize, call_gain)
    assert out_bf16.dtype == jnp.bfloat16
    assert jnp.allclose(out_bf16.astype(jnp.float32),
                        ref_bf16.astype(jnp.float32), atol=2e-2, rtol=2e-2)

    print("KERNEL_OK")
</pallas_src>

<mosaic_0001>
module attributes {stable_mosaic.version = 11 : i64} {
  func.func @_fourier_kernel(%arg0: i32, %arg1: memref<8x1xf32, #tpu.memory_space<vmem>>, %arg2: memref<1x256xf32, #tpu.memory_space<vmem>>, %arg3: memref<1x256xf32, #tpu.memory_space<vmem>>, %arg4: memref<8x256xf32, #tpu.memory_space<vmem>>) attributes {dimension_semantics = [#tpu.dimension_semantics<parallel>], iteration_bounds = array<i64: 1>, scalar_prefetch = 0 : i64, scratch_operands = 0 : i64, tpu.core_type = #tpu.core_type<tc>, window_params = [{transform_indices = @transform_0, window_bounds = array<i64: 8, 1>}, {pipeline_mode = #tpu.pipeline_mode<synchronous>, transform_indices = @transform_1, window_bounds = array<i64: 1, 256>}, {pipeline_mode = #tpu.pipeline_mode<synchronous>, transform_indices = @transform_2, window_bounds = array<i64: 1, 256>}, {transform_indices = @transform_3, window_bounds = array<i64: 8, 256>}]} {
    %c0 = arith.constant 0 : index
    %c0_0 = arith.constant 0 : index
    %0 = vector.load %arg1[%c0, %c0_0] : memref<8x1xf32, #tpu.memory_space<vmem>>, vector<8x1xf32>
    %c0_1 = arith.constant 0 : index
    %c0_2 = arith.constant 0 : index
    %1 = vector.load %arg2[%c0_1, %c0_2] : memref<1x256xf32, #tpu.memory_space<vmem>>, vector<1x256xf32>
    %c0_3 = arith.constant 0 : index
    %c0_4 = arith.constant 0 : index
    %2 = vector.load %arg3[%c0_3, %c0_4] : memref<1x256xf32, #tpu.memory_space<vmem>>, vector<1x256xf32>
    %3 = vector.broadcast %0 : vector<8x1xf32> to vector<8x256xf32>
    %4 = vector.broadcast %1 : vector<1x256xf32> to vector<8x256xf32>
    %5 = arith.mulf %3, %4 : vector<8x256xf32>
    %6 = vector.broadcast %2 : vector<1x256xf32> to vector<8x256xf32>
    %7 = arith.addf %5, %6 : vector<8x256xf32>
    %8 = math.cos %7 : vector<8x256xf32>
    %cst = arith.constant 1.41421354 : f32
    %9 = vector.broadcast %cst : f32 to vector<8x256xf32>
    %10 = arith.mulf %8, %9 : vector<8x256xf32>
    %c0_5 = arith.constant 0 : index
    %c0_6 = arith.constant 0 : index
    %11 = vector.load %arg4[%c0_5, %c0_6] : memref<8x256xf32, #tpu.memory_space<vmem>>, vector<8x256xf32>
    tpu.vector_store %arg4[%c0_5, %c0_6], %10 {strides = array<i32>} : memref<8x256xf32, #tpu.memory_space<vmem>>, vector<8x256xf32>,
    return
  }
  func.func @transform_0(%arg0: i32) -> (i32, i32) {
    %c0_i32 = arith.constant 0 : i32
    %c0_i32_0 = arith.constant 0 : i32
    return %arg0, %c0_i32 : i32, i32
  }
  func.func @transform_1(%arg0: i32) -> (i32, i32) {
    %c0_i32 = arith.constant 0 : i32
    %c0_i32_0 = arith.constant 0 : i32
    %c0_i32_1 = arith.constant 0 : i32
    return %c0_i32, %c0_i32_0 : i32, i32
  }
  func.func @transform_2(%arg0: i32) -> (i32, i32) {
    %c0_i32 = arith.constant 0 : i32
    %c0_i32_0 = arith.constant 0 : i32
    %c0_i32_1 = arith.constant 0 : i32
    return %c0_i32, %c0_i32_0 : i32, i32
  }
  func.func @transform_3(%arg0: i32) -> (i32, i32) {
    %c0_i32 = arith.constant 0 : i32
    %c0_i32_0 = arith.constant 0 : i32
    return %arg0, %c0_i32 : i32, i32
  }
}

</mosaic_0001>

<llo_original>
// kernel: tpu_custom_call.1
$region0: #{tpu_custom_call.1}
  #allocation0 [shape = 'u32[]', space=smem, size = 0x4, offset = 0x4, fixed_abs, tag = 'smem constant byte address 0x4 - core index']
  #allocation1 [shape = 'u32[72,128]{1,0:T(1,128)}', space=vmem, size = 0x9000, scoped, tag = 'internal scratch']
  %s0 = inlined_call_operand.vmem [shape: f32[8,1], index: 0, kind: input, shape index: {}]
  %s1 = inlined_call_operand.vmem [shape: f32[1,256], index: 1, kind: input, shape index: {}]
  %s2 = inlined_call_operand.vmem [shape: f32[1,256], index: 2, kind: input, shape index: {}]
  %s3 = inlined_call_operand.hbm [shape: f32[8,256], index: 3, kind: output, shape index: {}]
  %s4 = sld [smem:[#allocation0]]
  $region22: #{tpu_custom_call.1} parent=0
    _
  %s6 = ssub.s32 1, %s4
  %s7 = scalar_select 0, %s6, %s4
  $region1: #{tpu_custom_call.1} parent=0
    #allocation2 [shape = 'u8[8192]{0}', space=vmem, size = 0x2000, scoped, tag = 'output window, operand 0, single buffered']
    #allocation3 [shape = 's32[1]{0}', space=sflag, size = 0x4, scoped, tag = 'scoped memory for tpu_custom_call.1']
    %8 = vsyncpa [#allocation3], 0
    // Predicated region
    $region2: #{tpu_custom_call.1} parent=1 // pred_check
      _
    $region3: #{tpu_custom_call.1} parent=1 // pred_check_branch
      %10 = sbr.rel (0) target = $region5
    $region4: #{tpu_custom_call.1} parent=1 // pred_region
      _
    $region5: #{tpu_custom_call.1} parent=1 // pred_fallthru
      _
    // Predicated region
    $region6: #{tpu_custom_call.1} parent=1 // pred_check
      _
    $region7: #{tpu_custom_call.1} parent=1 // pred_check_branch
      %12 = sbr.rel (0) target = $region9
    $region8: #{tpu_custom_call.1} parent=1 // pred_region
      _
    $region9: #{tpu_custom_call.1} parent=1 // pred_fallthru
      _
    // Predicated region
    $region10: #{tpu_custom_call.1} parent=1 // pred_check
      _
    $region11: #{tpu_custom_call.1} parent=1 // pred_check_branch
      %14 = sbr.rel (0) target = $region13
    $region12: #{tpu_custom_call.1} parent=1 // pred_region
      _
    $region13: #{tpu_custom_call.1} parent=1 // pred_fallthru
      _
    %v15 = vld [vmem:[%s0] sm:$0xff]
    %v16 = vld [vmem:[%s1] sm:$0x3]
    %v17 = vld [vmem:[%s2] sm:$0x3]
    %19 = vset.pattern.permute.xlu0 0
    %20 = vperm.xlu0 %19, %v15
    %v21 = vpop.permute.xlu0 %20
    %v24 = vperm.slane %v16, 0
    %v25 = vperm.slane %v16, 1
    %v28 = vmul.f32 %v21, %v24
    %v29 = vmul.f32 %v21, %v25
    %v31 = vperm.slane %v17, 0
    %v32 = vperm.slane %v17, 1
    %v35 = vadd.f32 %v28, %v31
    %v36 = vadd.f32 %v29, %v32
    %v37 = vand.u32 2147483647, %v35
    %vm38 = vcmp.le.f32.partialorder %v37, 0.7853982
    %vm39 = vcmp.lt.s32.totalorder %v35, 0
    %v40 = vand.u32 %v35, 2139095040
    %v41 = vshrl.u32 %v40, 23
    %v42 = vsub.s32 %v41, 127
    %v43 = vand.u32 2147483647, %v35
    %v44 = vand.u32 %v43, 8388607
    %v45 = vor.u32 %v44, 8388608
    %v46 = vsub.s32 0, %v45
    %v47 = vadd.s32 %v42, 1
    %vm48 = vcmp.gt.s32.totalorder %v47, 0
    %v49 = vsel %vm48, %v47, 0
    %v50 = vshrl.u32 %v49, 5
    %v51 = vand.u32 %v49, 31
    %v52 = vsub.s32 32, %v51
    %v53 = vshrl.u32 683565275, %v52
    %v54 = vshll.u32 683565275, %v51
    %v55 = vshrl.u32 2475754826, %v52
    %v56 = vor.u32 %v54, %v55
    %v57 = vshll.u32 2475754826, %v51
    %v58 = vshrl.u32 2131351028, %v52
    %v59 = vor.u32 %v57, %v58
    %v60 = vshll.u32 2131351028, %v51
    %v61 = vshrl.u32 2102212464, %v52
    %v62 = vor.u32 %v60, %v61
    %v63 = vshll.u32 2102212464, %v51
    %v64 = vshrl.u32 920167782, %v52
    %v65 = vor.u32 %v63, %v64
    %v66 = vshll.u32 920167782, %v51
    %v67 = vshrl.u32 1326507024, %v52
    %v68 = vor.u32 %v66, %v67
    %vm69 = vcmp.lt.s32.totalorder %v50, 1
    %vm70 = vcmp.lt.s32.totalorder %v50, 2
    %vm71 = vcmp.lt.s32.totalorder %v50, 3
    %vm72 = vcmp.lt.s32.totalorder %v50, 4
    %v73 = vsel %vm69, %v53, %v56
    %v74 = vsel %vm72, %v62, 2102212464
    %v75 = vsel %vm71, %v59, %v74
    %v76 = vsel %vm70, %v73, %v75
    %v77 = vsel %vm69, %v56, %v59
    %v78 = vsel %vm72, %v65, 920167782
    %v79 = vsel %vm71, %v62, %v78
    %v80 = vsel %vm70, %v77, %v79
    %v81 = vsel %vm69, %v59, %v62
    %v82 = vsel %vm72, %v68, 1326507024
    %v83 = vsel %vm71, %v65, %v82
    %v84 = vsel %vm70, %v81, %v83
    %v85 = vshll.u32 %v45, 8
    %v86 = vand.u32 %v85, 65535
    %v87 = vshrl.u32 %v85, 16
    %v88 = vand.u32 %v84, 65535
    %v89 = vshrl.u32 %v84, 16
    %v90 = vmul.u32 %v86, %v88
    %v91 = vmul.u32 %v86, %v89
    %v92 = vmul.u32 %v87, %v88
    %v93 = vmul.u32 %v87, %v89
    %v94 = vshll.u32 %v91, 16
    %v95 = vshrl.u32 %v91, 16
    %v96 = vshll.u32 %v92, 16
    %v97 = vshrl.u32 %v92, 16
    %vm98 = vc.u32 %v90, %v94
    %v99 = vsel %vm98, 1, 0
    %v100 = vadd.s32 %v90, %v94
    %v101 = vadd.s32 %v93, %v99
    %vm102 = vc.u32 %v100, %v96
    %v103 = vsel %vm102, 1, 0
    %v104 = vadd.s32 %v100, %v96
    %v105 = vadd.s32 %v101, %v103
    %v106 = vadd.s32 %v105, %v95
    %v107 = vadd.s32 %v106, %v97
    %v108 = vand.u32 %v85, 65535
    %v109 = vshrl.u32 %v85, 16
    %v110 = vand.u32 %v80, 65535
    %v111 = vshrl.u32 %v80, 16
    %v112 = vmul.u32 %v108, %v110
    %v113 = vmul.u32 %v108, %v111
    %v114 = vmul.u32 %v109, %v110
    %v115 = vmul.u32 %v109, %v111
    %v116 = vshll.u32 %v113, 16
    %v117 = vshrl.u32 %v113, 16
    %v118 = vshll.u32 %v114, 16
    %v119 = vshrl.u32 %v114, 16
    %vm120 = vc.u32 %v112, %v116
    %v121 = vsel %vm120, 1, 0
    %v122 = vadd.s32 %v112, %v116
    %v123 = vadd.s32 %v115, %v121
    %vm124 = vc.u32 %v122, %v118
    %v125 = vsel %vm124, 1, 0
    %v126 = vadd.s32 %v122, %v118
    %v127 = vadd.s32 %v123, %v125
    %v128 = vadd.s32 %v127, %v117
    %v129 = vadd.s32 %v128, %v119
    %v130 = vmul.u32 %v85, %v76
    %v131 = vadd.s32 %v107, %v126
    %vm132 = vc.u32 %v107, %v126
    %v133 = vadd.s32 %v129, 1
    %v134 = vsel %vm132, %v133, %v129
    %v135 = vadd.s32 %v130, %v134
    %v136 = vadd.s32 %v135, 536870912
    %v137 = vshrl.u32 %v136, 30
    %v138 = vshll.u32 %v137, 30
    %v139 = vsub.s32 %v135, %v138
    %vm140 = vcmp.lt.s32.totalorder %v139, 0
    %v141 = vsub.s32 0, %v139
    %v142 = vsel %vm140, %v141, %v139
    %v143 = vclz %v142
    %v144 = vsub.s32 %v143, 2
    %vm145 = vcmp.gt.s32.totalorder 0, %v144
    %v146 = vsel %vm145, 0, %v144
    %v147 = vsub.s32 32, %v146
    %v148 = vshll.u32 %v139, %v146
    %v149 = vshrl.u32 %v131, %v147
    %v150 = vor.u32 %v148, %v149
    %v151 = vsub.s32 4294967266, %v146
    %v152 = vadd.s32 %v151, 127
    %v153 = vshll.u32 %v152, 23
    %v154 = vor.u32 4788187, %v153
    %v155 = vand.u32 2147483647, %v154
    %v157 = vcvt.s32.f32 %v150
    %v158 = vmul.f32 %v157, %v155
    %v159 = vxor.u32 %v158, 2147483648
    %v160 = vsel %vm39, %v159, %v158
    %v161 = vsub.s32 4, %v137
    %v162 = vsel %vm39, %v161, %v137
    %v163 = vsel %vm38, %v35, %v160
    %v164 = vsel %vm38, 0, %v162
    %v165 = vmul.f32 %v163, %v163
    %v166 = vmul.f32 %v165, -0.001358992
    %v167 = vadd.f32 %v166, 0.041655596
    %v168 = vmul.f32 %v165, %v167
    %v169 = vadd.f32 %v168, -0.4999988
    %v170 = vmul.f32 %v165, %v169
    %v171 = vadd.f32 1.0, %v170
    %v172 = vmul.f32 %v163, %v163
    %v173 = vmul.f32 %v172, -0.00019511016
    %v174 = vadd.f32 %v173, 0.008332121
    %v175 = vmul.f32 %v172, %v174
    %v176 = vadd.f32 %v175, -0.16666654
    %v177 = vmul.f32 %v172, %v176
    %v178 = vadd.f32 %v177, 1.0
    %v179 = vmul.f32 %v178, %v163
    %vm180 = vweird.f32 %v35
    %v181 = vand.u32 %v164, 3
    %vm182 = vcmp.lt.s32.totalorder %v181, 2
    %vm183 = vcmp.eq.s32.totalorder %v181, 0
    %v184 = vxor.u32 %v179, 2147483648
    %v185 = vsel %vm183, %v171, %v184
    %vm186 = vcmp.eq.s32.totalorder %v181, 2
    %v187 = vxor.u32 %v171, 2147483648
    %v188 = vsel %vm186, %v187, %v179
    %v189 = vsel %vm182, %v185, %v188
    %v190 = vsel %vm180, nan, %v189
    %v191 = vand.u32 2147483647, %v36
    %vm192 = vcmp.le.f32.partialorder %v191, 0.7853982
    %vm193 = vcmp.lt.s32.totalorder %v36, 0
    %v194 = vand.u32 %v36, 2139095040
    %v195 = vshrl.u32 %v194, 23
    %v196 = vsub.s32 %v195, 127
    %v197 = vand.u32 2147483647, %v36
    %v198 = vand.u32 %v197, 8388607
    %v199 = vor.u32 %v198, 8388608
    %v200 = vsub.s32 0, %v199
    %v201 = vadd.s32 %v196, 1
    %vm202 = vcmp.gt.s32.totalorder %v201, 0
    %v203 = vsel %vm202, %v201, 0
    %v204 = vshrl.u32 %v203, 5
    %v205 = vand.u32 %v203, 31
    %v206 = vsub.s32 32, %v205
    %v207 = vshrl.u32 683565275, %v206
    %v208 = vshll.u32 683565275, %v205
    %v209 = vshrl.u32 2475754826, %v206
    %v210 = vor.u32 %v208, %v209
    %v211 = vshll.u32 2475754826, %v205
    %v212 = vshrl.u32 2131351028, %v206
    %v213 = vor.u32 %v211, %v212
    %v214 = vshll.u32 2131351028, %v205
    %v215 = vshrl.u32 2102212464, %v206
    %v216 = vor.u32 %v214, %v215
    %v217 = vshll.u32 2102212464, %v205
    %v218 = vshrl.u32 920167782, %v206
    %v219 = vor.u32 %v217, %v218
    %v220 = vshll.u32 920167782, %v205
    %v221 = vshrl.u32 1326507024, %v206
    %v222 = vor.u32 %v220, %v221
    %vm223 = vcmp.lt.s32.totalorder %v204, 1
    %vm224 = vcmp.lt.s32.totalorder %v204, 2
    %vm225 = vcmp.lt.s32.totalorder %v204, 3
    %vm226 = vcmp.lt.s32.totalorder %v204, 4
    %v227 = vsel %vm223, %v207, %v210
    %v228 = vsel %vm226, %v216, 2102212464
    %v229 = vsel %vm225, %v213, %v228
    %v230 = vsel %vm224, %v227, %v229
    %v231 = vsel %vm223, %v210, %v213
    %v232 = vsel %vm226, %v219, 920167782
    %v233 = vsel %vm225, %v216, %v232
    %v234 = vsel %vm224, %v231, %v233
    %v235 = vsel %vm223, %v213, %v216
    %v236 = vsel %vm226, %v222, 1326507024
    %v237 = vsel %vm225, %v219, %v236
    %v238 = vsel %vm224, %v235, %v237
    %v239 = vshll.u32 %v199, 8
    %v240 = vand.u32 %v239, 65535
    %v241 = vshrl.u32 %v239, 16
    %v242 = vand.u32 %v238, 65535
    %v243 = vshrl.u32 %v238, 16
    %v244 = vmul.u32 %v240, %v242
    %v245 = vmul.u32 %v240, %v243
    %v246 = vmul.u32 %v241, %v242
    %v247 = vmul.u32 %v241, %v243
    %v248 = vshll.u32 %v245, 16
    %v249 = vshrl.u32 %v245, 16
    %v250 = vshll.u32 %v246, 16
    %v251 = vshrl.u32 %v246, 16
    %vm252 = vc.u32 %v244, %v248
    %v253 = vsel %vm252, 1, 0
    %v254 = vadd.s32 %v244, %v248
    %v255 = vadd.s32 %v247, %v253
    %vm256 = vc.u32 %v254, %v250
    %v257 = vsel %vm256, 1, 0
    %v258 = vadd.s32 %v254, %v250
    %v259 = vadd.s32 %v255, %v257
    %v260 = vadd.s32 %v259, %v249
    %v261 = vadd.s32 %v260, %v251
    %v262 = vand.u32 %v239, 65535
    %v263 = vshrl.u32 %v239, 16
    %v264 = vand.u32 %v234, 65535
    %v265 = vshrl.u32 %v234, 16
    %v266 = vmul.u32 %v262, %v264
    %v267 = vmul.u32 %v262, %v265
    %v268 = vmul.u32 %v263, %v264
    %v269 = vmul.u32 %v263, %v265
    %v270 = vshll.u32 %v267, 16
    %v271 = vshrl.u32 %v267, 16
    %v272 = vshll.u32 %v268, 16
    %v273 = vshrl.u32 %v268, 16
    %vm274 = vc.u32 %v266, %v270
    %v275 = vsel %vm274, 1, 0
    %v276 = vadd.s32 %v266, %v270
    %v277 = vadd.s32 %v269, %v275
    %vm278 = vc.u32 %v276, %v272
    %v279 = vsel %vm278, 1, 0
    %v280 = vadd.s32 %v276, %v272
    %v281 = vadd.s32 %v277, %v279
    %v282 = vadd.s32 %v281, %v271
    %v283 = vadd.s32 %v282, %v273
    %v284 = vmul.u32 %v239, %v230
    %v285 = vadd.s32 %v261, %v280
    %vm286 = vc.u32 %v261, %v280
    %v287 = vadd.s32 %v283, 1
    %v288 = vsel %vm286, %v287, %v283
    %v289 = vadd.s32 %v284, %v288
    %v290 = vadd.s32 %v289, 536870912
    %v291 = vshrl.u32 %v290, 30
    %v292 = vshll.u32 %v291, 30
    %v293 = vsub.s32 %v289, %v292
    %vm294 = vcmp.lt.s32.totalorder %v293, 0
    %v295 = vsub.s32 0, %v293
    %v296 = vsel %vm294, %v295, %v293
    %v297 = vclz %v296
    %v298 = vsub.s32 %v297, 2
    %vm299 = vcmp.gt.s32.totalorder 0, %v298
    %v300 = vsel %vm299, 0, %v298
    %v301 = vsub.s32 32, %v300
    %v302 = vshll.u32 %v293, %v300
    %v303 = vshrl.u32 %v285, %v301
    %v304 = vor.u32 %v302, %v303
    %v305 = vsub.s32 4294967266, %v300
    %v306 = vadd.s32 %v305, 127
    %v307 = vshll.u32 %v306, 23
    %v308 = vor.u32 4788187, %v307
    %v309 = vand.u32 2147483647, %v308
    %v311 = vcvt.s32.f32 %v304
    %v312 = vmul.f32 %v311, %v309
    %v313 = vxor.u32 %v312, 2147483648
    %v314 = vsel %vm193, %v313, %v312
    %v315 = vsub.s32 4, %v291
    %v316 = vsel %vm193, %v315, %v291
    %v317 = vsel %vm192, %v36, %v314
    %v318 = vsel %vm192, 0, %v316
    %v319 = vmul.f32 %v317, %v317
    %v320 = vmul.f32 %v319, -0.001358992
    %v321 = vadd.f32 %v320, 0.041655596
    %v322 = vmul.f32 %v319, %v321
    %v323 = vadd.f32 %v322, -0.4999988
    %v324 = vmul.f32 %v319, %v323
    %v325 = vadd.f32 1.0, %v324
    %v326 = vmul.f32 %v317, %v317
    %v327 = vmul.f32 %v326, -0.00019511016
    %v328 = vadd.f32 %v327, 0.008332121
    %v329 = vmul.f32 %v326, %v328
    %v330 = vadd.f32 %v329, -0.16666654
    %v331 = vmul.f32 %v326, %v330
    %v332 = vadd.f32 %v331, 1.0
    %v333 = vmul.f32 %v332, %v317
    %vm334 = vweird.f32 %v36
    %v335 = vand.u32 %v318, 3
    %vm336 = vcmp.lt.s32.totalorder %v335, 2
    %vm337 = vcmp.eq.s32.totalorder %v335, 0
    %v338 = vxor.u32 %v333, 2147483648
    %v339 = vsel %vm337, %v325, %v338
    %vm340 = vcmp.eq.s32.totalorder %v335, 2
    %v341 = vxor.u32 %v325, 2147483648
    %v342 = vsel %vm340, %v341, %v333
    %v343 = vsel %vm336, %v339, %v342
    %v344 = vsel %vm334, nan, %v343
    %v345 = vmul.f32 %v190, 1.4142135
    %v346 = vmul.f32 %v344, 1.4142135
    %347 = vst [vmem:[#allocation2] sm:$0xff] %v345
    %348 = vst [vmem:[#allocation2 + $0x8] sm:$0xff] %v346
    // Predicated region
    $region14: #{tpu_custom_call.1} parent=1 // pred_check
      _
    $region15: #{tpu_custom_call.1} parent=1 // pred_check_branch
      %350 = sbr.rel (0) target = $region17
    $region16: #{tpu_custom_call.1} parent=1 // pred_region
      %352 = vsyncadd [#allocation3], 0
      %s354 = sshll.u32 [#allocation2], 4
      %s355 = int_to_ptr.vmem [resolvable:$true] %s354
      %s356 = sshll.u32 %s3, 4
      %s357 = int_to_ptr.hbm [resolvable:$true] %s356
      %359 = dma.vmem_to_hbm [thread:$0]  %s355, 256, %s357, [#allocation3]
    $region17: #{tpu_custom_call.1} parent=1 // pred_fallthru
      _
    // Predicated region
    $region18: #{tpu_custom_call.1} parent=1 // pred_check
      _
    $region19: #{tpu_custom_call.1} parent=1 // pred_check_branch
      %361 = sbr.rel (0) target = $region21
    $region20: #{tpu_custom_call.1} parent=1 // pred_region
      %363 = dma.done [#allocation3], 256
    $region21: #{tpu_custom_call.1} parent=1 // pred_fallthru
      _
    %364 = vsyncpa [#allocation3], 1

</llo_original>
